<compile_context>
chip_gen: v7x
topology: tpu7x:2x2x1
jax: 0.10.0
libtpu: 0.0.40
codegen_flags: <defaults>
</compile_context>

<pallas_src>
import functools

import jax
import jax.numpy as jnp
from jax import lax
from jax.experimental import pallas as pl
from jax.experimental.pallas import tpu as pltpu

LANES = 128
TILE_ROWS = 2048   # (2048, 128) f32 tile = 1 MiB; 2 inputs x 2 buffers = 4 MiB VMEM


def _sublane_pack(dtype):
    """Sublane packing of a dtype: f32 -> 8 rows/native tile, bf16 -> 16, int8/bool -> 32."""
    bits = jnp.dtype(dtype).itemsize * 8
    return max(8, 256 // max(bits, 8))


def _rcf_partial_sums_kernel(x_ref, y_ref, sum_l_ref, sum_ly_ref, sum_y_ref, *,
                             num_tiles, tiles_per_core, ncores, chunk_rows,
                             chunks_per_tile, n_last_valid, mask_last, unroll,
                             labels_are_float):
    if ncores == 1:
        step = pl.program_id(0)
        tile_idx = step
    else:
        c = pl.program_id(0)
        step = pl.program_id(1)
        tile_idx = c * tiles_per_core + step

    # Accumulators live in the (resident) output blocks; init once per core.
    @pl.when(step == 0)
    def _init():
        sum_l_ref[...] = jnp.zeros_like(sum_l_ref)
        sum_ly_ref[...] = jnp.zeros_like(sum_ly_ref)
        sum_y_ref[...] = jnp.zeros_like(sum_y_ref)

    def _load(row0):
        x = x_ref[pl.ds(row0, chunk_rows), :].astype(jnp.float32)
        yv = y_ref[pl.ds(row0, chunk_rows), :]
        if labels_are_float:
            # label.long().float(): truncation toward zero (two cheap VPU casts —
            # cheaper than a trunc = select(ceil, floor) chain).
            y = yv.astype(jnp.int32).astype(jnp.float32)
        else:
            y = yv.astype(jnp.float32)
        # Stable per-element BCE-with-logits: max(x,0) - x*y + log1p(exp(-|x|)).
        # NOTE: assumes truncated labels are {0,1}; other values would make torch's
        # binary_cross_entropy raise, so they are outside the contract here.
        ell = jnp.maximum(x, 0.0) - x * y + jnp.log1p(jnp.exp(-jnp.abs(x)))
        return ell, y

    def _run_chunks(num_chunks, carry):
        if num_chunks <= 0:          # static python int
            return carry
        def body(j, acc):
            acc_l, acc_ly, acc_y = acc
            row0 = pl.multiple_of(j * chunk_rows, chunk_rows)
            ell, y = _load(row0)
            return acc_l + ell, acc_ly + ell * y, acc_y + y
        return lax.fori_loop(0, num_chunks, body, carry,
                             unroll=min(unroll, num_chunks))

    def _boundary_chunk(chunk_idx, valid_elems, carry):
        # Only ONE (chunk_rows, 128) chunk ever needs masking (static chunk index / count).
        acc_l, acc_ly, acc_y = carry
        ell, y = _load(chunk_idx * chunk_rows)
        lin = (lax.broadcasted_iota(jnp.int32, (chunk_rows, LANES), 0) * LANES
               + lax.broadcasted_iota(jnp.int32, (chunk_rows, LANES), 1))
        valid = lin < valid_elems
        # Keep masking as a select (garbage VMEM beyond the data must not propagate).
        ell = jnp.where(valid, ell, 0.0)
        y = jnp.where(valid, y, 0.0)
        return acc_l + ell, acc_ly + ell * y, acc_y + y

    def _flush(carry):
        sum_l_ref[...] += carry[0]
        sum_ly_ref[...] += carry[1]
        sum_y_ref[...] += carry[2]

    zero = jnp.zeros((chunk_rows, LANES), jnp.float32)
    init = (zero, zero, zero)

    if mask_last:
        @pl.when(tile_idx < num_tiles - 1)
        def _interior():
            _flush(_run_chunks(chunks_per_tile, init))

        @pl.when(tile_idx == num_tiles - 1)
        def _last():
            chunk_elems = chunk_rows * LANES
            full = n_last_valid // chunk_elems           # static
            rem = n_last_valid % chunk_elems             # static
            carry = _run_chunks(full, init)
            if rem:
                carry = _boundary_chunk(full, rem, carry)
            _flush(carry)
    else:
        def _body():
            _flush(_run_chunks(chunks_per_tile, init))
        if ncores > 1:
            # Phantom (clamped) tiles of the core split contribute nothing.
            pl.when(tile_idx < num_tiles)(_body)
        else:
            _body()


def cross_entropy_loss_rcf(prediction, label, *, num_cores: int = 1):
    """Pallas implementation of CrossEntropyLossRCF.forward (returns a scalar).

    num_cores: set to 2 on TPU v7x (2 TensorCores/chip) to engage the CORE_PARALLEL
    split of the tile axis; leave at 1 on single-TensorCore chips (v5e/v6e).
    """
    x = jnp.ravel(prediction)
    y = jnp.ravel(label)
    n = x.shape[0]

    chunk_rows = max(_sublane_pack(x.dtype), _sublane_pack(y.dtype))
    align = chunk_rows * LANES

    if n % align != 0:
        # TODO(synk): this pad costs one extra HBM pass over both inputs; a tail-in-JAX or
        # 1-D-block scheme could remove it for ragged sizes.
        n_pad = pl.cdiv(n, align) * align
        x = jnp.pad(x, (0, n_pad - n))
        y = jnp.pad(y, (0, n_pad - n))
    else:
        n_pad = n

    rows = n_pad // LANES                                # multiple of chunk_rows
    tile_rows = min(TILE_ROWS, rows)                     # multiple of chunk_rows (>= 8)
    num_tiles = pl.cdiv(rows, tile_rows)
    ncores = max(1, int(num_cores))
    tiles_per_core = pl.cdiv(num_tiles, ncores)
    covered = num_tiles * tile_rows * LANES
    mask_last = covered != n                             # static python bool
    n_last_valid = n - (num_tiles - 1) * tile_rows * LANES
    chunks_per_tile = tile_rows // chunk_rows
    unroll = max(1, 64 // chunk_rows)                    # 8 for f32, 4 for bf16, 2 for int8
    labels_are_float = bool(jnp.issubdtype(y.dtype, jnp.floating))

    x2 = x.reshape(rows, LANES)
    y2 = y.reshape(rows, LANES)

    kernel = functools.partial(
        _rcf_partial_sums_kernel,
        num_tiles=num_tiles, tiles_per_core=tiles_per_core, ncores=ncores,
        chunk_rows=chunk_rows, chunks_per_tile=chunks_per_tile,
        n_last_valid=n_last_valid, mask_last=mask_last, unroll=unroll,
        labels_are_float=labels_are_float)

    xb = jnp.dtype(x.dtype).itemsize
    yb = jnp.dtype(y.dtype).itemsize
    cost = pl.CostEstimate(flops=12 * n_pad, transcendentals=2 * n_pad,
                           bytes_accessed=n_pad * (xb + yb))

    if ncores == 1:
        grid = (num_tiles,)
        in_map = lambda i: (i, 0)
        out_spec = pl.BlockSpec((chunk_rows, LANES), lambda i: (0, 0))
        acc_shape = jax.ShapeDtypeStruct((chunk_rows, LANES), jnp.float32)
        semantics = (pltpu.ARBITRARY,)
    else:
        grid = (ncores, tiles_per_core)

        def in_map(c, i):
            # Clamp so phantom steps never DMA out of range; the in-kernel
            # tile_idx < num_tiles guard discards their contribution.
            return (jnp.minimum(c * tiles_per_core + i, num_tiles - 1), 0)

        out_spec = pl.BlockSpec((None, chunk_rows, LANES), lambda c, i: (c, 0, 0))
        acc_shape = jax.ShapeDtypeStruct((ncores, chunk_rows, LANES), jnp.float32)
        semantics = (pltpu.CORE_PARALLEL, pltpu.ARBITRARY)

    sums = pl.pallas_call(
        kernel,
        out_shape=(acc_shape, acc_shape, acc_shape),
        grid_spec=pltpu.PrefetchScalarGridSpec(
            num_scalar_prefetch=0,
            grid=grid,
            in_specs=[pl.BlockSpec((tile_rows, LANES), in_map),
                      pl.BlockSpec((tile_rows, LANES), in_map)],
            out_specs=(out_spec, out_spec, out_spec),
        ),
        compiler_params=pltpu.CompilerParams(dimension_semantics=semantics),
        cost_estimate=cost,
    )(x2, y2)

    # Tiny finalization on 3 small partial-sum slabs.
    sum_l = jnp.sum(sums[0])      # sum of ell over all elements
    sum_ly = jnp.sum(sums[1])     # sum of ell over label==1
    num_pos = jnp.sum(sums[2])    # number of positives
    n_f = jnp.float32(n)
    num_neg = n_f - num_pos
    total = n_f
    w_pos = 1.0 * num_neg / total
    w_neg = 1.1 * num_pos / total
    # torch's sequential masked assignment: if num_neg == 0 the first assignment writes 0
    # into the (label==1) slots, which the second assignment then overwrites with w_neg.
    w_pos = jnp.where(num_neg == 0, w_neg, w_pos)
    s1 = sum_ly
    s0 = sum_l - sum_ly
    return w_pos * s1 + w_neg * s0


def _reference_rcf(prediction, label):
    """Pure-JAX transcription of the PyTorch forward (for checking)."""
    p = jax.nn.sigmoid(prediction).astype(jnp.float32)
    y = jnp.trunc(label.astype(jnp.float32))             # label.long().float()
    num_pos = jnp.sum(y == 1).astype(jnp.float32)
    num_neg = jnp.sum(y == 0).astype(jnp.float32)
    total = num_pos + num_neg
    w = y
    w = jnp.where(w == 1, 1.0 * num_neg / total, w)
    w = jnp.where(w == 0, 1.1 * num_pos / total, w)
    log_p = jnp.maximum(jnp.log(p), -100.0)
    log_1mp = jnp.maximum(jnp.log(1.0 - p), -100.0)
    cost = -w * (y * log_p + (1.0 - y) * log_1mp)
    return jnp.sum(cost)


if __name__ == "__main__":
    key = jax.random.PRNGKey(0)
    keys = jax.random.split(key, 8)

    def check(pred, lab, rtol=1e-4, atol=1e-2):
        loss = cross_entropy_loss_rcf(pred, lab)
        jax.block_until_ready(loss)
        ref = _reference_rcf(pred, lab)
        assert jnp.allclose(loss, ref, rtol=rtol, atol=atol), (loss, ref)

    # 1) Primary NCHW case: lane/sublane aligned, single tile, no masking.
    pred = jax.random.normal(keys[0], (2, 4, 16, 16), dtype=jnp.float32)
    lab = (jax.random.uniform(keys[1], (2, 4, 16, 16)) > 0.5).astype(jnp.float32)
    check(pred, lab, atol=1e-3)

    # 2) Unaligned case: exercises the pad + single boundary-chunk mask path.
    pred2 = jax.random.normal(keys[2], (2, 1, 33, 37), dtype=jnp.float32)
    lab2 = (jax.random.uniform(keys[3], (2, 1, 33, 37)) > 0.5).astype(jnp.float32)
    check(pred2, lab2, atol=1e-3)

    # 3) Multi-tile case with a partial (masked) last tile.
    pred3 = jax.random.normal(keys[4], (5, 4, 128, 128), dtype=jnp.float32)
    lab3 = (jax.random.uniform(keys[5], (5, 4, 128, 128)) > 0.5).astype(jnp.float32)
    check(pred3, lab3, rtol=1e-4, atol=3e-2)

    # 4) Narrow-dtype path: bf16 predictions (fewer HBM bytes), f32 labels.
    pred4 = jax.random.normal(keys[6], (2, 4, 16, 16), dtype=jnp.bfloat16)
    lab4 = (jax.random.uniform(keys[7], (2, 4, 16, 16)) > 0.5).astype(jnp.float32)
    check(pred4, lab4, rtol=2e-2, atol=2e-1)

    print("KERNEL_OK")
</pallas_src>

<mosaic_0001>
module attributes {stable_mosaic.version = 11 : i64} {
  func.func @_rcf_partial_sums_kernel(%arg0: i32, %arg1: memref<16x128xf32, #tpu.memory_space<vmem>>, %arg2: memref<16x128xf32, #tpu.memory_space<vmem>>, %arg3: memref<8x128xf32, #tpu.memory_space<vmem>>, %arg4: memref<8x128xf32, #tpu.memory_space<vmem>>, %arg5: memref<8x128xf32, #tpu.memory_space<vmem>>) attributes {dimension_semantics = [#tpu.dimension_semantics<arbitrary>], iteration_bounds = array<i64: 1>, scalar_prefetch = 0 : i64, scratch_operands = 0 : i64, tpu.core_type = #tpu.core_type<tc>, window_params = [{transform_indices = @transform_0, window_bounds = array<i64: 16, 128>}, {transform_indices = @transform_1, window_bounds = array<i64: 16, 128>}, {pipeline_mode = #tpu.pipeline_mode<synchronous>, transform_indices = @transform_2, window_bounds = array<i64: 8, 128>}, {pipeline_mode = #tpu.pipeline_mode<synchronous>, transform_indices = @transform_3, window_bounds = array<i64: 8, 128>}, {pipeline_mode = #tpu.pipeline_mode<synchronous>, transform_indices = @transform_4, window_bounds = array<i64: 8, 128>}]} {
    %c0_i32 = arith.constant 0 : i32
    %0 = arith.cmpi eq, %arg0, %c0_i32 : i32
    %1 = arith.extui %0 : i1 to i32
    %c0_i32_0 = arith.constant 0 : i32
    %2 = arith.cmpi ne, %1, %c0_i32_0 : i32
    scf.if %2 {
      %cst_22 = arith.constant 0.000000e+00 : f32
      %57 = vector.broadcast %cst_22 : f32 to vector<8x128xf32>
      %c0_23 = arith.constant 0 : index
      %c0_24 = arith.constant 0 : index
      %58 = vector.load %arg3[%c0_23, %c0_24] : memref<8x128xf32, #tpu.memory_space<vmem>>, vector<8x128xf32>
      tpu.vector_store %arg3[%c0_23, %c0_24], %57 {strides = array<i32>} : memref<8x128xf32, #tpu.memory_space<vmem>>, vector<8x128xf32>,
      %cst_25 = arith.constant 0.000000e+00 : f32
      %59 = vector.broadcast %cst_25 : f32 to vector<8x128xf32>
      %c0_26 = arith.constant 0 : index
      %c0_27 = arith.constant 0 : index
      %60 = vector.load %arg4[%c0_26, %c0_27] : memref<8x128xf32, #tpu.memory_space<vmem>>, vector<8x128xf32>
      tpu.vector_store %arg4[%c0_26, %c0_27], %59 {strides = array<i32>} : memref<8x128xf32, #tpu.memory_space<vmem>>, vector<8x128xf32>,
      %cst_28 = arith.constant 0.000000e+00 : f32
      %61 = vector.broadcast %cst_28 : f32 to vector<8x128xf32>
      %c0_29 = arith.constant 0 : index
      %c0_30 = arith.constant 0 : index
      %62 = vector.load %arg5[%c0_29, %c0_30] : memref<8x128xf32, #tpu.memory_space<vmem>>, vector<8x128xf32>
      tpu.vector_store %arg5[%c0_29, %c0_30], %61 {strides = array<i32>} : memref<8x128xf32, #tpu.memory_space<vmem>>, vector<8x128xf32>,
    } else {
    }
    %cst = arith.constant 0.000000e+00 : f32
    %3 = vector.broadcast %cst : f32 to vector<8x128xf32>
    %c0_i32_1 = arith.constant 0 : i32
    %c8_i32 = arith.constant 8 : i32
    %4 = arith.muli %c0_i32_1, %c8_i32 : i32
    %5 = tpu.assume_multiple %4, 8 : i32
    %6 = arith.index_cast %5 : i32 to index
    %c0 = arith.constant 0 : index
    %7 = vector.load %arg1[%6, %c0] : memref<16x128xf32, #tpu.memory_space<vmem>>, vector<8x128xf32>
    %8 = arith.index_cast %5 : i32 to index
    %c0_2 = arith.constant 0 : index
    %9 = vector.load %arg2[%8, %c0_2] : memref<16x128xf32, #tpu.memory_space<vmem>>, vector<8x128xf32>
    %10 = arith.fptosi %9 : vector<8x128xf32> to vector<8x128xi32>
    %11 = arith.sitofp %10 : vector<8x128xi32> to vector<8x128xf32>
    %cst_3 = arith.constant 0.000000e+00 : f32
    %12 = vector.broadcast %cst_3 : f32 to vector<8x128xf32>
    %13 = arith.maximumf %7, %12 : vector<8x128xf32>
    %14 = arith.mulf %7, %11 : vector<8x128xf32>
    %15 = arith.subf %13, %14 : vector<8x128xf32>
    %16 = math.absf %7 : vector<8x128xf32>
    %cst_4 = arith.constant 0.000000e+00 : f32
    %17 = vector.broadcast %cst_4 : f32 to vector<8x128xf32>
    %18 = arith.subf %17, %16 : vector<8x128xf32>
    %19 = math.exp %18 : vector<8x128xf32>
    %20 = math.log1p %19 : vector<8x128xf32>
    %21 = arith.addf %15, %20 : vector<8x128xf32>
    %22 = arith.addf %3, %21 : vector<8x128xf32>
    %23 = arith.mulf %21, %11 : vector<8x128xf32>
    %24 = arith.addf %3, %23 : vector<8x128xf32>
    %25 = arith.addf %3, %11 : vector<8x128xf32>
    %c1_i32 = arith.constant 1 : i32
    %c8_i32_5 = arith.constant 8 : i32
    %26 = arith.muli %c1_i32, %c8_i32_5 : i32
    %27 = tpu.assume_multiple %26, 8 : i32
    %28 = arith.index_cast %27 : i32 to index
    %c0_6 = arith.constant 0 : index
    %29 = vector.load %arg1[%28, %c0_6] : memref<16x128xf32, #tpu.memory_space<vmem>>, vector<8x128xf32>
    %30 = arith.index_cast %27 : i32 to index
    %c0_7 = arith.constant 0 : index
    %31 = vector.load %arg2[%30, %c0_7] : memref<16x128xf32, #tpu.memory_space<vmem>>, vector<8x128xf32>
    %32 = arith.fptosi %31 : vector<8x128xf32> to vector<8x128xi32>
    %33 = arith.sitofp %32 : vector<8x128xi32> to vector<8x128xf32>
    %cst_8 = arith.constant 0.000000e+00 : f32
    %34 = vector.broadcast %cst_8 : f32 to vector<8x128xf32>
    %35 = arith.maximumf %29, %34 : vector<8x128xf32>
    %36 = arith.mulf %29, %33 : vector<8x128xf32>
    %37 = arith.subf %35, %36 : vector<8x128xf32>
    %38 = math.absf %29 : vector<8x128xf32>
    %cst_9 = arith.constant 0.000000e+00 : f32
    %39 = vector.broadcast %cst_9 : f32 to vector<8x128xf32>
    %40 = arith.subf %39, %38 : vector<8x128xf32>
    %41 = math.exp %40 : vector<8x128xf32>
    %42 = math.log1p %41 : vector<8x128xf32>
    %43 = arith.addf %37, %42 : vector<8x128xf32>
    %44 = arith.addf %22, %43 : vector<8x128xf32>
    %45 = arith.mulf %43, %33 : vector<8x128xf32>
    %46 = arith.addf %24, %45 : vector<8x128xf32>
    %47 = arith.addf %25, %33 : vector<8x128xf32>
    %c2_i32 = arith.constant 2 : i32
    %c0_10 = arith.constant 0 : index
    %c0_11 = arith.constant 0 : index
    %48 = vector.load %arg3[%c0_10, %c0_11] : memref<8x128xf32, #tpu.memory_space<vmem>>, vector<8x128xf32>
    %49 = arith.addf %48, %44 : vector<8x128xf32>
    %c0_12 = arith.constant 0 : index
    %c0_13 = arith.constant 0 : index
    %50 = vector.load %arg3[%c0_12, %c0_13] : memref<8x128xf32, #tpu.memory_space<vmem>>, vector<8x128xf32>
    tpu.vector_store %arg3[%c0_12, %c0_13], %49 {strides = array<i32>} : memref<8x128xf32, #tpu.memory_space<vmem>>, vector<8x128xf32>,
    %c0_14 = arith.constant 0 : index
    %c0_15 = arith.constant 0 : index
    %51 = vector.load %arg4[%c0_14, %c0_15] : memref<8x128xf32, #tpu.memory_space<vmem>>, vector<8x128xf32>
    %52 = arith.addf %51, %46 : vector<8x128xf32>
    %c0_16 = arith.constant 0 : index
    %c0_17 = arith.constant 0 : index
    %53 = vector.load %arg4[%c0_16, %c0_17] : memref<8x128xf32, #tpu.memory_space<vmem>>, vector<8x128xf32>
    tpu.vector_store %arg4[%c0_16, %c0_17], %52 {strides = array<i32>} : memref<8x128xf32, #tpu.memory_space<vmem>>, vector<8x128xf32>,
    %c0_18 = arith.constant 0 : index
    %c0_19 = arith.constant 0 : index
    %54 = vector.load %arg5[%c0_18, %c0_19] : memref<8x128xf32, #tpu.memory_space<vmem>>, vector<8x128xf32>
    %55 = arith.addf %54, %47 : vector<8x128xf32>
    %c0_20 = arith.constant 0 : index
    %c0_21 = arith.constant 0 : index
    %56 = vector.load %arg5[%c0_20, %c0_21] : memref<8x128xf32, #tpu.memory_space<vmem>>, vector<8x128xf32>
    tpu.vector_store %arg5[%c0_20, %c0_21], %55 {strides = array<i32>} : memref<8x128xf32, #tpu.memory_space<vmem>>, vector<8x128xf32>,
    return
  }
  func.func @transform_0(%arg0: i32) -> (i32, i32) {
    %c0_i32 = arith.constant 0 : i32
    %c0_i32_0 = arith.constant 0 : i32
    return %arg0, %c0_i32 : i32, i32
  }
  func.func @transform_1(%arg0: i32) -> (i32, i32) {
    %c0_i32 = arith.constant 0 : i32
    %c0_i32_0 = arith.constant 0 : i32
    return %arg0, %c0_i32 : i32, i32
  }
  func.func @transform_2(%arg0: i32) -> (i32, i32) {
    %c0_i32 = arith.constant 0 : i32
    %c0_i32_0 = arith.constant 0 : i32
    %c0_i32_1 = arith.constant 0 : i32
    return %c0_i32, %c0_i32_0 : i32, i32
  }
  func.func @transform_3(%arg0: i32) -> (i32, i32) {
    %c0_i32 = arith.constant 0 : i32
    %c0_i32_0 = arith.constant 0 : i32
    %c0_i32_1 = arith.constant 0 : i32
    return %c0_i32, %c0_i32_0 : i32, i32
  }
  func.func @transform_4(%arg0: i32) -> (i32, i32) {
    %c0_i32 = arith.constant 0 : i32
    %c0_i32_0 = arith.constant 0 : i32
    %c0_i32_1 = arith.constant 0 : i32
    return %c0_i32, %c0_i32_0 : i32, i32
  }
}

</mosaic_0001>

<llo_original>
// kernel: tpu_custom_call.1
$region0: #{tpu_custom_call.1}
  #allocation0 [shape = 'u32[]', space=smem, size = 0x4, offset = 0x4, fixed_abs, tag = 'smem constant byte address 0x4 - core index']
  #allocation1 [shape = 'u32[144,128]{1,0:T(1,128)}', space=vmem, size = 0x12000, scoped, tag = 'internal scratch']
  %s0 = inlined_call_operand.hbm [shape: f32[16,128], index: 0, kind: input, shape index: {}]
  %s1 = inlined_call_operand.hbm [shape: f32[16,128], index: 1, kind: input, shape index: {}]
  %s2 = inlined_call_operand.hbm [shape: f32[8,128], index: 2, kind: output, shape index: {0}]
  %s3 = inlined_call_operand.hbm [shape: f32[8,128], index: 3, kind: output, shape index: {1}]
  %s4 = inlined_call_operand.hbm [shape: f32[8,128], index: 4, kind: output, shape index: {2}]
  %5 = xla_tuple %s2, %s3, %s4
  %s6 = sld [smem:[#allocation0]]
  $region46: #{tpu_custom_call.1} parent=0
    _
  %s8 = ssub.s32 1, %s6
  %s9 = scalar_select 0, %s8, %s6
  $region1: #{tpu_custom_call.1} parent=0
    #allocation2 [shape = 'u8[8192]{0}', space=vmem, size = 0x2000, scoped, tag = 'input window, operand 0, single buffered']
    #allocation3 [shape = 's32[1]{0}', space=sflag, size = 0x4, scoped, tag = 'scoped memory for tpu_custom_call.1']
    #allocation4 [shape = 's32[1]{0}', space=sflag, size = 0x4, scoped, tag = 'scoped memory for tpu_custom_call.1']
    #allocation5 [shape = 'u8[8192]{0}', space=vmem, size = 0x2000, scoped, tag = 'input window, operand 1, single buffered']
    #allocation6 [shape = 's32[1]{0}', space=sflag, size = 0x4, scoped, tag = 'scoped memory for tpu_custom_call.1']
    #allocation7 [shape = 'u8[4096]{0}', space=vmem, size = 0x1000, scoped, tag = 'output window, operand 0, single buffered']
    #allocation8 [shape = 'u8[4096]{0}', space=vmem, size = 0x1000, scoped, tag = 'output window, operand 1, single buffered']
    #allocation9 [shape = 's32[1]{0}', space=sflag, size = 0x4, scoped, tag = 'scoped memory for tpu_custom_call.1']
    #allocation10 [shape = 'u8[4096]{0}', space=vmem, size = 0x1000, scoped, tag = 'output window, operand 2, single buffered']
    %10 = vsyncpa [#allocation3], 0
    %11 = vsyncpa [#allocation6], 0
    %12 = vsyncpa [#allocation4], 0
    %13 = vsyncpa [#allocation9], 0
    // Predicated region
    $region2: #{tpu_custom_call.1} parent=1 // pred_check
      _
    $region3: #{tpu_custom_call.1} parent=1 // pred_check_branch
      %15 = sbr.rel (0) target = $region5
    $region4: #{tpu_custom_call.1} parent=1 // pred_region
      %s17 = ssub.s32 256, 256
      %18 = vsyncadd [#allocation3], %s17
      %s19 = sshll.u32 [#allocation2], 4
      %s20 = int_to_ptr.vmem [resolvable:$true] %s19
      %25 = dma.hbm_to_vmem [thread:$0]  %s0, 256, %s20, [#allocation3], 128, 128, 8
    $region5: #{tpu_custom_call.1} parent=1 // pred_fallthru
      _
    // Predicated region
    $region6: #{tpu_custom_call.1} parent=1 // pred_check
      _
    $region7: #{tpu_custom_call.1} parent=1 // pred_check_branch
      %27 = sbr.rel (0) target = $region9
    $region8: #{tpu_custom_call.1} parent=1 // pred_region
      %s29 = ssub.s32 256, 256
      %30 = vsyncadd [#allocation6], %s29
      %s31 = sshll.u32 [#allocation5], 4
      %s32 = int_to_ptr.vmem [resolvable:$true] %s31
      %37 = dma.hbm_to_vmem [thread:$0]  %s1, 256, %s32, [#allocation6], 128, 128, 8
    $region9: #{tpu_custom_call.1} parent=1 // pred_fallthru
      _
    // Predicated region
    $region10: #{tpu_custom_call.1} parent=1 // pred_check
      _
    $region11: #{tpu_custom_call.1} parent=1 // pred_check_branch
      %39 = sbr.rel (0) target = $region13
    $region12: #{tpu_custom_call.1} parent=1 // pred_region
      %40 = dma.done [#allocation3], 256
    $region13: #{tpu_custom_call.1} parent=1 // pred_fallthru
      _
    // Predicated region
    $region14: #{tpu_custom_call.1} parent=1 // pred_check
      _
    $region15: #{tpu_custom_call.1} parent=1 // pred_check_branch
      %42 = sbr.rel (0) target = $region17
    $region16: #{tpu_custom_call.1} parent=1 // pred_region
      %43 = dma.done [#allocation6], 256
    $region17: #{tpu_custom_call.1} parent=1 // pred_fallthru
      _
    %p44 = scmp.eq.s32.totalorder 0, 0
    // Predicated region
    $region18: #{tpu_custom_call.1} parent=1 // pred_check
      %p45 = pneg %p44
    $region19: #{tpu_custom_call.1} parent=1 // pred_check_branch
      %47 = sbr.rel (%p45) target = $region21
    $region20: #{tpu_custom_call.1} parent=1 // pred_region
      %48 = vst [vmem:[#allocation7] sm:$0xff] 0.0
      %49 = vst [vmem:[#allocation8] sm:$0xff] 0.0
      %50 = vst [vmem:[#allocation10] sm:$0xff] 0.0
    $region21: #{tpu_custom_call.1} parent=1 // pred_fallthru
      _
    %v51 = vld [vmem:[#allocation2] sm:$0xff]
    %v52 = vld [vmem:[#allocation5] sm:$0xff]
    %v53 = vcvt.f32.s32.to.zero.pseudo %v52
    %v54 = vcvt.s32.f32 %v53
    %v55 = vmax.f32 %v51, 0.0
    %v56 = vmul.f32 %v51, %v54
    %v57 = vsub.f32 %v55, %v56
    %v58 = vand.u32 2147483647, %v51
    %v59 = vsub.f32 0.0, %v58
    %v60 = vmul.f32 %v59, 1.442695
    %v61 = vpow.pop %v60
    %v62 = vadd.f32 %v61, 1.0
    %v63 = vlog2.pop %v62
    %v64 = vmul.f32 %v63, 0.6931472
    %v65 = vmul.f32 -0.5, %v61
    %v66 = vadd.f32 %v65, 1.0
    %v67 = vmul.f32 %v66, %v61
    %v68 = vand.u32 2147483647, %v61
    %vm69 = vcmp.lt.f32.partialorder %v68, 0.0004427343
    %v70 = vsel %vm69, %v67, %v64
    %v71 = vadd.f32 %v57, %v70
    %v72 = vadd.f32 %v71, 0.0
    %v73 = vmul.f32 %v71, %v54
    %v74 = vadd.f32 %v73, 0.0
    %v75 = vadd.f32 %v54, 0.0
    %s76 = scalar_lea.vmem [#allocation2], 8
    %v77 = vld [vmem:[%s76] sm:$0xff]
    %s78 = scalar_lea.vmem [#allocation5], 8
    %v79 = vld [vmem:[%s78] sm:$0xff]
    %v80 = vcvt.f32.s32.to.zero.pseudo %v79
    %v81 = vcvt.s32.f32 %v80
    %v82 = vmax.f32 %v77, 0.0
    %v83 = vmul.f32 %v77, %v81
    %v84 = vsub.f32 %v82, %v83
    %v85 = vand.u32 2147483647, %v77
    %v86 = vsub.f32 0.0, %v85
    %v87 = vmul.f32 %v86, 1.442695
    %v88 = vpow.pop %v87
    %v89 = vadd.f32 %v88, 1.0
    %v90 = vlog2.pop %v89
    %v91 = vmul.f32 %v90, 0.6931472
    %v92 = vmul.f32 -0.5, %v88
    %v93 = vadd.f32 %v92, 1.0
    %v94 = vmul.f32 %v93, %v88
    %v95 = vand.u32 2147483647, %v88
    %vm96 = vcmp.lt.f32.partialorder %v95, 0.0004427343
    %v97 = vsel %vm96, %v94, %v91
    %v98 = vadd.f32 %v84, %v97
    %v99 = vadd.f32 %v72, %v98
    %v100 = vmul.f32 %v98, %v81
    %v101 = vadd.f32 %v74, %v100
    %v102 = vadd.f32 %v75, %v81
    %v103 = vld [vmem:[#allocation7] sm:$0xff]
    %v104 = vadd.f32 %v103, %v99
    %105 = vst [vmem:[#allocation7] sm:$0xff] %v104
    %v106 = vld [vmem:[#allocation8] sm:$0xff]
    %v107 = vadd.f32 %v106, %v101
    %108 = vst [vmem:[#allocation8] sm:$0xff] %v107
    %v109 = vld [vmem:[#allocation10] sm:$0xff]
    %v110 = vadd.f32 %v109, %v102
    %111 = vst [vmem:[#allocation10] sm:$0xff] %v110
    // Predicated region
    $region22: #{tpu_custom_call.1} parent=1 // pred_check
      _
    $region23: #{tpu_custom_call.1} parent=1 // pred_check_branch
      %113 = sbr.rel (0) target = $region25
    $region24: #{tpu_custom_call.1} parent=1 // pred_region
      %s115 = ssub.s32 128, 128
      %116 = vsyncadd [#allocation4], %s115
      %s118 = sshll.u32 [#allocation7], 4
      %s119 = int_to_ptr.vmem [resolvable:$true] %s118
      %121 = dma.vmem_to_hbm [thread:$0]  %s119, 128, %s2, [#allocation4]
    $region25: #{tpu_custom_call.1} parent=1 // pred_fallthru
      _
    // Predicated region
    $region26: #{tpu_custom_call.1} parent=1 // pred_check
      _
    $region27: #{tpu_custom_call.1} parent=1 // pred_check_branch
      %123 = sbr.rel (0) target = $region29
    $region28: #{tpu_custom_call.1} parent=1 // pred_region
      %s125 = ssub.s32 128, 128
      %126 = vsyncadd [#allocation9], %s125
      %s128 = sshll.u32 [#allocation8], 4
      %s129 = int_to_ptr.vmem [resolvable:$true] %s128
      %131 = dma.vmem_to_hbm [thread:$0]  %s129, 128, %s3, [#allocation9]
    $region29: #{tpu_custom_call.1} parent=1 // pred_fallthru
      _
    // Predicated region
    $region30: #{tpu_custom_call.1} parent=1 // pred_check
      _
    $region31: #{tpu_custom_call.1} parent=1 // pred_check_branch
      %133 = sbr.rel (0) target = $region33
    $region32: #{tpu_custom_call.1} parent=1 // pred_region
      %s135 = ssub.s32 128, 128
      %136 = vsyncadd [#allocation9], %s135
      %s138 = sshll.u32 [#allocation10], 4
      %s139 = int_to_ptr.vmem [resolvable:$true] %s138
      %141 = dma.vmem_to_hbm [thread:$0]  %s139, 128, %s4, [#allocation9]
    $region33: #{tpu_custom_call.1} parent=1 // pred_fallthru
      _
    // Predicated region
    $region34: #{tpu_custom_call.1} parent=1 // pred_check
      _
    $region35: #{tpu_custom_call.1} parent=1 // pred_check_branch
      %143 = sbr.rel (0) target = $region37
    $region36: #{tpu_custom_call.1} parent=1 // pred_region
      %144 = dma.done [#allocation4], 128
    $region37: #{tpu_custom_call.1} parent=1 // pred_fallthru
      _
    // Predicated region
    $region38: #{tpu_custom_call.1} parent=1 // pred_check
      _
    $region39: #{tpu_custom_call.1} parent=1 // pred_check_branch
      %146 = sbr.rel (0) target = $region41
    $region40: #{tpu_custom_call.1} parent=1 // pred_region
      %147 = dma.done [#allocation9], 128
    $region41: #{tpu_custom_call.1} parent=1 // pred_fallthru
      _
    // Predicated region
    $region42: #{tpu_custom_call.1} parent=1 // pred_check
      _
    $region43: #{tpu_custom_call.1} parent=1 // pred_check_branch
      %149 = sbr.rel (0) target = $region45
    $region44: #{tpu_custom_call.1} parent=1 // pred_region
      %150 = dma.done [#allocation9], 128
    $region45: #{tpu_custom_call.1} parent=1 // pred_fallthru
      _
    %151 = vsyncpa [#allocation3], 1
    %152 = vsyncpa [#allocation6], 1
    %153 = vsyncpa [#allocation4], 1
    %154 = vsyncpa [#allocation9], 1

</llo_original>
